<compile_context>
chip_gen: v7x
topology: tpu7x:2x2x1
jax: 0.10.0
libtpu: 0.0.40
codegen_flags: <defaults>
</compile_context>

<pallas_src>
import functools
import math

import jax
import jax.numpy as jnp
from jax import lax
from jax.experimental import pallas as pl
from jax.experimental.pallas import tpu as pltpu

LAYERS = 2
WIDTH = 10
IN_DIM = 2
OUT_DIM = 1

_LANE = 128
_MAX_CHUNK = 512          # in-kernel lane-chunk width (vreg-pressure bound)
_DEFAULT_TB = 32768       # grid/DMA tile (lanes per step), multiple of 512


def _round_up(n, m):
    return ((n + m - 1) // m) * m


def _num_tensorcores():
    """Best-effort TensorCore count of the local device; defaults to 1."""
    try:
        dev = jax.local_devices()[0]
        return max(1, int(getattr(dev, "num_cores", 1)))
    except Exception:  # pragma: no cover - defensive
        return 1


def _mlp_kernel(x_ref, w1_ref, b1_ref, w2_ref, b2_ref, wf_ref, bf_ref, o_ref):
    """Fused 3-layer MLP on one batch tile; batch on the lane axis.

    x_ref : (IN_DIM, TILE)      w1_ref: (WIDTH, IN_DIM)   b1_ref: (WIDTH, 1)
    o_ref : (OUT_DIM, TILE)     w2_ref: (WIDTH, WIDTH)    b2_ref: (WIDTH, 1)
                                wf_ref: (WIDTH, OUT_DIM)  bf_ref: (OUT_DIM, 1)
    """
    tile = o_ref.shape[-1]
    chunk = tile if tile <= _MAX_CHUNK else math.gcd(tile, _MAX_CHUNK)
    n_chunks = tile // chunk

    # --- Hoisted out of the chunk loop: tiny weight loads, column slices,
    #     biases (avoid re-emitting slices/broadcast_in_dim each iteration).
    w1 = w1_ref[...]                              # (WIDTH, IN_DIM)
    w2 = w2_ref[...]                              # (WIDTH, WIDTH)
    wf_col = wf_ref[...]                          # (WIDTH, 1), lane-broadcasts
    b1 = b1_ref[...]                              # (WIDTH, 1)
    b2 = b2_ref[...]                              # (WIDTH, 1)
    bf = bf_ref[...]                              # (1, 1)
    w1_cols = [w1[:, k:k + 1] for k in range(IN_DIM)]
    w2_cols = [w2[:, k:k + 1] for k in range(WIDTH)]

    def compute_chunk(c):
        start = pl.multiple_of(c * chunk, chunk)
        xc = x_ref[:, pl.ds(start, chunk)]        # (IN_DIM, chunk)

        # Layer 1: 2 -> 10, K=2 broadcast-FMA (bias = init).  VPU.
        h = b1 + w1_cols[0] * xc[0:1, :]
        for k in range(1, IN_DIM):
            h = h + w1_cols[k] * xc[k:k + 1, :]
        h = jnp.tanh(h)                           # EUP

        # Layer 2: 10 -> 10, unrolled K=10 broadcast-FMA.  VPU.
        a = b2 + w2_cols[0] * h[0:1, :]
        for k in range(1, WIDTH):
            a = a + w2_cols[k] * h[k:k + 1, :]
        h = jnp.tanh(a)                           # EUP

        # Output layer: 10 -> 1 as lane-broadcast mult + cross-sublane
        # reduce (XLU) instead of 10 unrolled (1, chunk) FMAs.
        out = bf + jnp.sum(wf_col * h, axis=0, keepdims=True)
        o_ref[:, pl.ds(start, chunk)] = out.astype(o_ref.dtype)

    if n_chunks == 1:
        compute_chunk(0)
    else:
        @pl.loop(0, n_chunks)
        def _(c):
            compute_chunk(c)


@functools.partial(jax.jit, static_argnames=("tb", "num_cores"))
def net_forward(x, params, *, tb=_DEFAULT_TB, num_cores=1):
    """x: (N, 2) float32 -> (N, 1) float32. params in PyTorch layout."""
    N = x.shape[0]
    assert x.shape[1] == IN_DIM
    assert tb % _MAX_CHUNK == 0 and tb % _LANE == 0

    # --- Pick the grid tile (lanes per step). ---------------------------
    n_min = _round_up(max(N, 1), _LANE)
    if n_min > tb:
        tile = tb
    elif num_cores > 1 and n_min > _LANE:
        # Multi-TensorCore part: give every core work on the "parallel" axis.
        tile = _round_up(-(-n_min // num_cores), _LANE)
    else:
        # Single-TC chip (v5e/v6e) or tiny batch: one grid step, no extra
        # per-step overhead.
        tile = n_min
    n_pad = _round_up(max(N, 1), tile)
    grid = (n_pad // tile,)

    # --- Batch on lanes: feed x^T; skip the padded copy when unneeded. --
    x32 = x.astype(jnp.float32)
    if n_pad == N:
        xt = x32.T
    else:
        xt = jnp.pad(x32, ((0, n_pad - N), (0, 0))).T

    w1, b1, w2, b2, wf_col, bf = (
        params["w1"], params["b1"], params["w2"],
        params["b2"], params["wf"].T, params["bf"],
    )

    in_specs = [
        pl.BlockSpec((IN_DIM, tile), lambda i: (0, i)),    # x^T tile (streamed)
        pl.BlockSpec((WIDTH, IN_DIM), lambda i: (0, 0)),   # w1 (resident)
        pl.BlockSpec((WIDTH, 1), lambda i: (0, 0)),        # b1
        pl.BlockSpec((WIDTH, WIDTH), lambda i: (0, 0)),    # w2
        pl.BlockSpec((WIDTH, 1), lambda i: (0, 0)),        # b2
        pl.BlockSpec((WIDTH, OUT_DIM), lambda i: (0, 0)),  # wf (as column)
        pl.BlockSpec((OUT_DIM, 1), lambda i: (0, 0)),      # bf
    ]
    out_spec = pl.BlockSpec((OUT_DIM, tile), lambda i: (0, i))

    out_t = pl.pallas_call(
        _mlp_kernel,
        out_shape=jax.ShapeDtypeStruct((OUT_DIM, n_pad), jnp.float32),
        grid_spec=pltpu.PrefetchScalarGridSpec(
            num_scalar_prefetch=0,
            grid=grid,
            in_specs=in_specs,
            out_specs=out_spec,
        ),
        compiler_params=pltpu.CompilerParams(
            dimension_semantics=("parallel",),
        ),
    )(xt, w1, b1, w2, b2, wf_col, bf)

    if n_pad != N:
        out_t = out_t[:, :N]
    return out_t.T  # (N, 1)


def init_params(key):
    """nn.Linear-style init U(-1/sqrt(fan_in), 1/sqrt(fan_in)).

    Weights in PyTorch layout (out_features, in_features); biases as
    (out_features, 1) columns so they broadcast over the lane (batch) axis."""
    k1, k2, k3, k4, k5, k6 = jax.random.split(key, 6)

    def uni(k, shape, fan_in):
        bound = 1.0 / jnp.sqrt(jnp.float32(fan_in))
        return jax.random.uniform(
            k, shape, dtype=jnp.float32, minval=-bound, maxval=bound)

    return {
        "w1": uni(k1, (WIDTH, IN_DIM), IN_DIM),
        "b1": uni(k2, (WIDTH, 1), IN_DIM),
        "w2": uni(k3, (WIDTH, WIDTH), WIDTH),
        "b2": uni(k4, (WIDTH, 1), WIDTH),
        "wf": uni(k5, (OUT_DIM, WIDTH), WIDTH),
        "bf": uni(k6, (OUT_DIM, 1), WIDTH),
    }


def reference_forward(x, params):
    hp = lax.Precision.HIGHEST
    h = jnp.tanh(jnp.dot(x, params["w1"].T, precision=hp) + params["b1"].T)
    h = jnp.tanh(jnp.dot(h, params["w2"].T, precision=hp) + params["b2"].T)
    return jnp.dot(h, params["wf"].T, precision=hp) + params["bf"].T


if __name__ == "__main__":
    key = jax.random.PRNGKey(0)
    kp, kx1, kx2 = jax.random.split(key, 3)

    params = init_params(kp)
    ncores = _num_tensorcores()

    # Small van-der-Pol-style batch of 2-D states (single grid step).
    N = 16
    x = jax.random.normal(kx1, (N, IN_DIM), dtype=jnp.float32)
    out = jax.block_until_ready(net_forward(x, params, num_cores=ncores))
    ref = reference_forward(x, params)
    assert out.shape == (N, OUT_DIM)
    assert jnp.allclose(out, ref, atol=1e-5, rtol=1e-5)

    # Ragged batch: exercises zero-pad path and the in-kernel chunk loop.
    N2 = 1000
    x2 = jax.random.normal(kx2, (N2, IN_DIM), dtype=jnp.float32)
    out2 = jax.block_until_ready(net_forward(x2, params, num_cores=ncores))
    ref2 = reference_forward(x2, params)
    assert out2.shape == (N2, OUT_DIM)
    assert jnp.allclose(out2, ref2, atol=1e-5, rtol=1e-5)

    print("KERNEL_OK")
</pallas_src>

<mosaic_0001>
module attributes {stable_mosaic.version = 11 : i64} {
  func.func @_mlp_kernel(%arg0: i32, %arg1: memref<2x128xf32, #tpu.memory_space<vmem>>, %arg2: memref<10x2xf32, #tpu.memory_space<vmem>>, %arg3: memref<10x1xf32, #tpu.memory_space<vmem>>, %arg4: memref<10x10xf32, #tpu.memory_space<vmem>>, %arg5: memref<10x1xf32, #tpu.memory_space<vmem>>, %arg6: memref<10x1xf32, #tpu.memory_space<vmem>>, %arg7: memref<1x1xf32, #tpu.memory_space<vmem>>, %arg8: memref<1x128xf32, #tpu.memory_space<vmem>>) attributes {dimension_semantics = [#tpu.dimension_semantics<parallel>], iteration_bounds = array<i64: 1>, scalar_prefetch = 0 : i64, scratch_operands = 0 : i64, tpu.core_type = #tpu.core_type<tc>, window_params = [{transform_indices = @transform_0, window_bounds = array<i64: 2, 128>}, {pipeline_mode = #tpu.pipeline_mode<synchronous>, transform_indices = @transform_1, window_bounds = array<i64: 10, 2>}, {pipeline_mode = #tpu.pipeline_mode<synchronous>, transform_indices = @transform_2, window_bounds = array<i64: 10, 1>}, {pipeline_mode = #tpu.pipeline_mode<synchronous>, transform_indices = @transform_3, window_bounds = array<i64: 10, 10>}, {pipeline_mode = #tpu.pipeline_mode<synchronous>, transform_indices = @transform_4, window_bounds = array<i64: 10, 1>}, {pipeline_mode = #tpu.pipeline_mode<synchronous>, transform_indices = @transform_5, window_bounds = array<i64: 10, 1>}, {pipeline_mode = #tpu.pipeline_mode<synchronous>, transform_indices = @transform_6, window_bounds = array<i64: 1, 1>}, {transform_indices = @transform_7, window_bounds = array<i64: 1, 128>}]} {
    %c0 = arith.constant 0 : index
    %c0_0 = arith.constant 0 : index
    %0 = vector.load %arg2[%c0, %c0_0] : memref<10x2xf32, #tpu.memory_space<vmem>>, vector<10x2xf32>
    %c0_1 = arith.constant 0 : index
    %c0_2 = arith.constant 0 : index
    %1 = vector.load %arg4[%c0_1, %c0_2] : memref<10x10xf32, #tpu.memory_space<vmem>>, vector<10x10xf32>
    %c0_3 = arith.constant 0 : index
    %c0_4 = arith.constant 0 : index
    %2 = vector.load %arg6[%c0_3, %c0_4] : memref<10x1xf32, #tpu.memory_space<vmem>>, vector<10x1xf32>
    %c0_5 = arith.constant 0 : index
    %c0_6 = arith.constant 0 : index
    %3 = vector.load %arg3[%c0_5, %c0_6] : memref<10x1xf32, #tpu.memory_space<vmem>>, vector<10x1xf32>
    %c0_7 = arith.constant 0 : index
    %c0_8 = arith.constant 0 : index
    %4 = vector.load %arg5[%c0_7, %c0_8] : memref<10x1xf32, #tpu.memory_space<vmem>>, vector<10x1xf32>
    %c0_9 = arith.constant 0 : index
    %c0_10 = arith.constant 0 : index
    %5 = vector.load %arg7[%c0_9, %c0_10] : memref<1x1xf32, #tpu.memory_space<vmem>>, vector<1x1xf32>
    %6 = vector.extract_strided_slice %0 {offsets = [0, 0], sizes = [10, 1], strides = [1, 1]} : vector<10x2xf32> to vector<10x1xf32>
    %7 = vector.extract_strided_slice %0 {offsets = [0, 1], sizes = [10, 1], strides = [1, 1]} : vector<10x2xf32> to vector<10x1xf32>
    %8 = vector.extract_strided_slice %1 {offsets = [0, 0], sizes = [10, 1], strides = [1, 1]} : vector<10x10xf32> to vector<10x1xf32>
    %9 = vector.extract_strided_slice %1 {offsets = [0, 1], sizes = [10, 1], strides = [1, 1]} : vector<10x10xf32> to vector<10x1xf32>
    %10 = vector.extract_strided_slice %1 {offsets = [0, 2], sizes = [10, 1], strides = [1, 1]} : vector<10x10xf32> to vector<10x1xf32>
    %11 = vector.extract_strided_slice %1 {offsets = [0, 3], sizes = [10, 1], strides = [1, 1]} : vector<10x10xf32> to vector<10x1xf32>
    %12 = vector.extract_strided_slice %1 {offsets = [0, 4], sizes = [10, 1], strides = [1, 1]} : vector<10x10xf32> to vector<10x1xf32>
    %13 = vector.extract_strided_slice %1 {offsets = [0, 5], sizes = [10, 1], strides = [1, 1]} : vector<10x10xf32> to vector<10x1xf32>
    %14 = vector.extract_strided_slice %1 {offsets = [0, 6], sizes = [10, 1], strides = [1, 1]} : vector<10x10xf32> to vector<10x1xf32>
    %15 = vector.extract_strided_slice %1 {offsets = [0, 7], sizes = [10, 1], strides = [1, 1]} : vector<10x10xf32> to vector<10x1xf32>
    %16 = vector.extract_strided_slice %1 {offsets = [0, 8], sizes = [10, 1], strides = [1, 1]} : vector<10x10xf32> to vector<10x1xf32>
    %17 = vector.extract_strided_slice %1 {offsets = [0, 9], sizes = [10, 1], strides = [1, 1]} : vector<10x10xf32> to vector<10x1xf32>
    %c0_i32 = arith.constant 0 : i32
    %18 = tpu.assume_multiple %c0_i32, 128 : i32
    %c0_11 = arith.constant 0 : index
    %19 = arith.index_cast %18 : i32 to index
    %20 = vector.load %arg1[%c0_11, %19] : memref<2x128xf32, #tpu.memory_space<vmem>>, vector<2x128xf32>
    %21 = vector.extract_strided_slice %20 {offsets = [0, 0], sizes = [1, 128], strides = [1, 1]} : vector<2x128xf32> to vector<1x128xf32>
    %22 = vector.broadcast %6 : vector<10x1xf32> to vector<10x128xf32>
    %23 = vector.broadcast %21 : vector<1x128xf32> to vector<10x128xf32>
    %24 = arith.mulf %22, %23 : vector<10x128xf32>
    %25 = vector.broadcast %3 : vector<10x1xf32> to vector<10x128xf32>
    %26 = arith.addf %25, %24 : vector<10x128xf32>
    %27 = vector.extract_strided_slice %20 {offsets = [1, 0], sizes = [1, 128], strides = [1, 1]} : vector<2x128xf32> to vector<1x128xf32>
    %28 = vector.broadcast %7 : vector<10x1xf32> to vector<10x128xf32>
    %29 = vector.broadcast %27 : vector<1x128xf32> to vector<10x128xf32>
    %30 = arith.mulf %28, %29 : vector<10x128xf32>
    %31 = arith.addf %26, %30 : vector<10x128xf32>
    %32 = math.tanh %31 : vector<10x128xf32>
    %33 = vector.extract_strided_slice %32 {offsets = [0, 0], sizes = [1, 128], strides = [1, 1]} : vector<10x128xf32> to vector<1x128xf32>
    %34 = vector.broadcast %8 : vector<10x1xf32> to vector<10x128xf32>
    %35 = vector.broadcast %33 : vector<1x128xf32> to vector<10x128xf32>
    %36 = arith.mulf %34, %35 : vector<10x128xf32>
    %37 = vector.broadcast %4 : vector<10x1xf32> to vector<10x128xf32>
    %38 = arith.addf %37, %36 : vector<10x128xf32>
    %39 = vector.extract_strided_slice %32 {offsets = [1, 0], sizes = [1, 128], strides = [1, 1]} : vector<10x128xf32> to vector<1x128xf32>
    %40 = vector.broadcast %9 : vector<10x1xf32> to vector<10x128xf32>
    %41 = vector.broadcast %39 : vector<1x128xf32> to vector<10x128xf32>
    %42 = arith.mulf %40, %41 : vector<10x128xf32>
    %43 = arith.addf %38, %42 : vector<10x128xf32>
    %44 = vector.extract_strided_slice %32 {offsets = [2, 0], sizes = [1, 128], strides = [1, 1]} : vector<10x128xf32> to vector<1x128xf32>
    %45 = vector.broadcast %10 : vector<10x1xf32> to vector<10x128xf32>
    %46 = vector.broadcast %44 : vector<1x128xf32> to vector<10x128xf32>
    %47 = arith.mulf %45, %46 : vector<10x128xf32>
    %48 = arith.addf %43, %47 : vector<10x128xf32>
    %49 = vector.extract_strided_slice %32 {offsets = [3, 0], sizes = [1, 128], strides = [1, 1]} : vector<10x128xf32> to vector<1x128xf32>
    %50 = vector.broadcast %11 : vector<10x1xf32> to vector<10x128xf32>
    %51 = vector.broadcast %49 : vector<1x128xf32> to vector<10x128xf32>
    %52 = arith.mulf %50, %51 : vector<10x128xf32>
    %53 = arith.addf %48, %52 : vector<10x128xf32>
    %54 = vector.extract_strided_slice %32 {offsets = [4, 0], sizes = [1, 128], strides = [1, 1]} : vector<10x128xf32> to vector<1x128xf32>
    %55 = vector.broadcast %12 : vector<10x1xf32> to vector<10x128xf32>
    %56 = vector.broadcast %54 : vector<1x128xf32> to vector<10x128xf32>
    %57 = arith.mulf %55, %56 : vector<10x128xf32>
    %58 = arith.addf %53, %57 : vector<10x128xf32>
    %59 = vector.extract_strided_slice %32 {offsets = [5, 0], sizes = [1, 128], strides = [1, 1]} : vector<10x128xf32> to vector<1x128xf32>
    %60 = vector.broadcast %13 : vector<10x1xf32> to vector<10x128xf32>
    %61 = vector.broadcast %59 : vector<1x128xf32> to vector<10x128xf32>
    %62 = arith.mulf %60, %61 : vector<10x128xf32>
    %63 = arith.addf %58, %62 : vector<10x128xf32>
    %64 = vector.extract_strided_slice %32 {offsets = [6, 0], sizes = [1, 128], strides = [1, 1]} : vector<10x128xf32> to vector<1x128xf32>
    %65 = vector.broadcast %14 : vector<10x1xf32> to vector<10x128xf32>
    %66 = vector.broadcast %64 : vector<1x128xf32> to vector<10x128xf32>
    %67 = arith.mulf %65, %66 : vector<10x128xf32>
    %68 = arith.addf %63, %67 : vector<10x128xf32>
    %69 = vector.extract_strided_slice %32 {offsets = [7, 0], sizes = [1, 128], strides = [1, 1]} : vector<10x128xf32> to vector<1x128xf32>
    %70 = vector.broadcast %15 : vector<10x1xf32> to vector<10x128xf32>
    %71 = vector.broadcast %69 : vector<1x128xf32> to vector<10x128xf32>
    %72 = arith.mulf %70, %71 : vector<10x128xf32>
    %73 = arith.addf %68, %72 : vector<10x128xf32>
    %74 = vector.extract_strided_slice %32 {offsets = [8, 0], sizes = [1, 128], strides = [1, 1]} : vector<10x128xf32> to vector<1x128xf32>
    %75 = vector.broadcast %16 : vector<10x1xf32> to vector<10x128xf32>
    %76 = vector.broadcast %74 : vector<1x128xf32> to vector<10x128xf32>
    %77 = arith.mulf %75, %76 : vector<10x128xf32>
    %78 = arith.addf %73, %77 : vector<10x128xf32>
    %79 = vector.extract_strided_slice %32 {offsets = [9, 0], sizes = [1, 128], strides = [1, 1]} : vector<10x128xf32> to vector<1x128xf32>
    %80 = vector.broadcast %17 : vector<10x1xf32> to vector<10x128xf32>
    %81 = vector.broadcast %79 : vector<1x128xf32> to vector<10x128xf32>
    %82 = arith.mulf %80, %81 : vector<10x128xf32>
    %83 = arith.addf %78, %82 : vector<10x128xf32>
    %84 = math.tanh %83 : vector<10x128xf32>
    %85 = vector.broadcast %2 : vector<10x1xf32> to vector<10x128xf32>
    %86 = arith.mulf %85, %84 : vector<10x128xf32>
    %cst = arith.constant dense<0.000000e+00> : vector<128xf32>
    %87 = vector.multi_reduction <add>, %86, %cst [0] : vector<10x128xf32> to vector<128xf32>
    %88 = vector.shape_cast %87 : vector<128xf32> to vector<1x128xf32>
    %89 = vector.broadcast %5 : vector<1x1xf32> to vector<1x128xf32>
    %90 = arith.addf %89, %88 : vector<1x128xf32>
    %c0_12 = arith.constant 0 : index
    %91 = arith.index_cast %18 : i32 to index
    %92 = vector.load %arg8[%c0_12, %91] : memref<1x128xf32, #tpu.memory_space<vmem>>, vector<1x128xf32>
    tpu.vector_store %arg8[%c0_12, %91], %90 {strides = array<i32>} : memref<1x128xf32, #tpu.memory_space<vmem>>, vector<1x128xf32>,
    return
  }
  func.func @transform_0(%arg0: i32) -> (i32, i32) {
    %c0_i32 = arith.constant 0 : i32
    %c0_i32_0 = arith.constant 0 : i32
    return %c0_i32, %arg0 : i32, i32
  }
  func.func @transform_1(%arg0: i32) -> (i32, i32) {
    %c0_i32 = arith.constant 0 : i32
    %c0_i32_0 = arith.constant 0 : i32
    %c0_i32_1 = arith.constant 0 : i32
    return %c0_i32, %c0_i32_0 : i32, i32
  }
  func.func @transform_2(%arg0: i32) -> (i32, i32) {
    %c0_i32 = arith.constant 0 : i32
    %c0_i32_0 = arith.constant 0 : i32
    %c0_i32_1 = arith.constant 0 : i32
    return %c0_i32, %c0_i32_0 : i32, i32
  }
  func.func @transform_3(%arg0: i32) -> (i32, i32) {
    %c0_i32 = arith.constant 0 : i32
    %c0_i32_0 = arith.constant 0 : i32
    %c0_i32_1 = arith.constant 0 : i32
    return %c0_i32, %c0_i32_0 : i32, i32
  }
  func.func @transform_4(%arg0: i32) -> (i32, i32) {
    %c0_i32 = arith.constant 0 : i32
    %c0_i32_0 = arith.constant 0 : i32
    %c0_i32_1 = arith.constant 0 : i32
    return %c0_i32, %c0_i32_0 : i32, i32
  }
  func.func @transform_5(%arg0: i32) -> (i32, i32) {
    %c0_i32 = arith.constant 0 : i32
    %c0_i32_0 = arith.constant 0 : i32
    %c0_i32_1 = arith.constant 0 : i32
    return %c0_i32, %c0_i32_0 : i32, i32
  }
  func.func @transform_6(%arg0: i32) -> (i32, i32) {
    %c0_i32 = arith.constant 0 : i32
    %c0_i32_0 = arith.constant 0 : i32
    %c0_i32_1 = arith.constant 0 : i32
    return %c0_i32, %c0_i32_0 : i32, i32
  }
  func.func @transform_7(%arg0: i32) -> (i32, i32) {
    %c0_i32 = arith.constant 0 : i32
    %c0_i32_0 = arith.constant 0 : i32
    return %c0_i32, %arg0 : i32, i32
  }
}

</mosaic_0001>

<llo_original>
// kernel: net_forward.1
$region0: #{net_forward.1}
  #allocation0 [shape = 'u32[]', space=smem, size = 0x4, offset = 0x4, fixed_abs, tag = 'smem constant byte address 0x4 - core index']
  #allocation1 [shape = 'u32[144,128]{1,0:T(1,128)}', space=vmem, size = 0x12000, scoped, tag = 'internal scratch']
  #allocation2 [shape = 'f32[1,1]{1,0:T(1,128)S(1)}', space=vmem, size = 0x200, scoped, tag = 'scoped memory for net_forward.1']
  %s0 = inlined_call_operand.vmem [shape: f32[2,128], index: 0, kind: input, shape index: {}]
  %s1 = inlined_call_operand.vmem [shape: f32[10,2], index: 1, kind: input, shape index: {}]
  %s2 = inlined_call_operand.vmem [shape: f32[10,1], index: 2, kind: input, shape index: {}]
  %s3 = inlined_call_operand.vmem [shape: f32[10,10], index: 3, kind: input, shape index: {}]
  %s4 = inlined_call_operand.vmem [shape: f32[10,1], index: 4, kind: input, shape index: {}]
  %s5 = inlined_call_operand.vmem [shape: f32[10,1], index: 5, kind: input, shape index: {}]
  %s6 = inlined_call_operand.<no memory space> [shape: f32[1,1], index: 6, kind: input, shape index: {}]
  %s7 = inlined_call_operand.vmem [shape: f32[1,128], index: 7, kind: output, shape index: {}]
  %s8 = sld [smem:[#allocation0]]
  $region38: #{net_forward.1} parent=0
    _
  %s10 = ssub.s32 1, %s8
  %s11 = scalar_select 0, %s10, %s8
  %v12 = vstv %s6
  %13 = vst [vmem:[#allocation2] sm:$0x1] %v12
  // Predicated region
  $region2: #{net_forward.1} parent=0 // pred_check
    _
  $region3: #{net_forward.1} parent=0 // pred_check_branch
    %15 = sbr.rel (0) target = $region5
  $region4: #{net_forward.1} parent=0 // pred_region
    _
  $region5: #{net_forward.1} parent=0 // pred_fallthru
    _
  // Predicated region
  $region6: #{net_forward.1} parent=0 // pred_check
    _
  $region7: #{net_forward.1} parent=0 // pred_check_branch
    %17 = sbr.rel (0) target = $region9
  $region8: #{net_forward.1} parent=0 // pred_region
    _
  $region9: #{net_forward.1} parent=0 // pred_fallthru
    _
  // Predicated region
  $region10: #{net_forward.1} parent=0 // pred_check
    _
  $region11: #{net_forward.1} parent=0 // pred_check_branch
    %19 = sbr.rel (0) target = $region13
  $region12: #{net_forward.1} parent=0 // pred_region
    _
  $region13: #{net_forward.1} parent=0 // pred_fallthru
    _
  // Predicated region
  $region14: #{net_forward.1} parent=0 // pred_check
    _
  $region15: #{net_forward.1} parent=0 // pred_check_branch
    %21 = sbr.rel (0) target = $region17
  $region16: #{net_forward.1} parent=0 // pred_region
    _
  $region17: #{net_forward.1} parent=0 // pred_fallthru
    _
  // Predicated region
  $region18: #{net_forward.1} parent=0 // pred_check
    _
  $region19: #{net_forward.1} parent=0 // pred_check_branch
    %23 = sbr.rel (0) target = $region21
  $region20: #{net_forward.1} parent=0 // pred_region
    _
  $region21: #{net_forward.1} parent=0 // pred_fallthru
    _
  // Predicated region
  $region22: #{net_forward.1} parent=0 // pred_check
    _
  $region23: #{net_forward.1} parent=0 // pred_check_branch
    %25 = sbr.rel (0) target = $region25
  $region24: #{net_forward.1} parent=0 // pred_region
    _
  $region25: #{net_forward.1} parent=0 // pred_fallthru
    _
  // Predicated region
  $region26: #{net_forward.1} parent=0 // pred_check
    _
  $region27: #{net_forward.1} parent=0 // pred_check_branch
    %27 = sbr.rel (0) target = $region29
  $region28: #{net_forward.1} parent=0 // pred_region
    _
  $region29: #{net_forward.1} parent=0 // pred_fallthru
    _
  %v28 = vld [vmem:[%s1] sm:$0xff]
  %v29 = vld [vmem:[%s1 + $0x8] sm:$0x3]
  %v30 = vld [vmem:[%s3] sm:$0xff]
  %v31 = vld [vmem:[%s3 + $0x8] sm:$0x3]
  %v32 = vld [vmem:[%s5] sm:$0xff]
  %v33 = vld [vmem:[%s5 + $0x8] sm:$0x3]
  %v34 = vld [vmem:[%s2] sm:$0xff]
  %v35 = vld [vmem:[%s2 + $0x8] sm:$0x3]
  %v36 = vld [vmem:[%s4] sm:$0xff]
  %v37 = vld [vmem:[%s4 + $0x8] sm:$0x3]
  %v38 = vld [vmem:[#allocation2] sm:$0x1]
  %v39 = vld [vmem:[%s0] sm:$0x3]
  %41 = vset.pattern.permute.xlu0 0
  %42 = vperm.xlu0 %41, %v28
  %v43 = vpop.permute.xlu0 %42
  %46 = vset.pattern.permute.xlu0 0
  %47 = vperm.xlu0 %46, %v29
  %v48 = vpop.permute.xlu0 %47
  %v50 = vlaneseq
  %v51 = vshrl.u32 %v50, 7
  %v52 = vsub.s32 0, %v51
  %v53 = vrot.slane %v39, %v52
  %v54 = vmul.f32 %v43, %v53
  %v55 = vmul.f32 %v48, %v53
  %57 = vset.pattern.permute.xlu0 0
  %58 = vperm.xlu0 %57, %v34
  %v59 = vpop.permute.xlu0 %58
  %62 = vset.pattern.permute.xlu0 0
  %63 = vperm.xlu0 %62, %v35
  %v64 = vpop.permute.xlu0 %63
  %v66 = vadd.f32 %v59, %v54
  %v67 = vadd.f32 %v64, %v55
  %68 = vset.pattern.permute.xlu0 1
  %69 = vperm.xlu0 %68, %v28
  %v70 = vpop.permute.xlu0 %69
  %72 = vset.pattern.permute.xlu0 1
  %73 = vperm.xlu0 %72, %v29
  %v74 = vpop.permute.xlu0 %73
  %v76 = vlaneseq
  %v77 = vshrl.u32 %v76, 7
  %v78 = vsub.s32 1, %v77
  %v79 = vrot.slane %v39, %v78
  %v80 = vmul.f32 %v70, %v79
  %v81 = vmul.f32 %v74, %v79
  %v82 = vadd.f32 %v66, %v80
  %v83 = vadd.f32 %v67, %v81
  %v84 = vtanh.pop %v82
  %v85 = vtanh.pop %v83
  %87 = vset.pattern.permute.xlu0 0
  %88 = vperm.xlu0 %87, %v30
  %v89 = vpop.permute.xlu0 %88
  %92 = vset.pattern.permute.xlu0 0
  %93 = vperm.xlu0 %92, %v31
  %v94 = vpop.permute.xlu0 %93
  %v96 = vlaneseq
  %v97 = vshrl.u32 %v96, 7
  %v98 = vsub.s32 0, %v97
  %v99 = vrot.slane %v84, %v98
  %v100 = vmul.f32 %v89, %v99
  %v101 = vmul.f32 %v94, %v99
  %103 = vset.pattern.permute.xlu0 0
  %104 = vperm.xlu0 %103, %v36
  %v105 = vpop.permute.xlu0 %104
  %108 = vset.pattern.permute.xlu0 0
  %109 = vperm.xlu0 %108, %v37
  %v110 = vpop.permute.xlu0 %109
  %v112 = vadd.f32 %v105, %v100
  %v113 = vadd.f32 %v110, %v101
  %114 = vset.pattern.permute.xlu0 1
  %115 = vperm.xlu0 %114, %v30
  %v116 = vpop.permute.xlu0 %115
  %118 = vset.pattern.permute.xlu0 1
  %119 = vperm.xlu0 %118, %v31
  %v120 = vpop.permute.xlu0 %119
  %v122 = vlaneseq
  %v123 = vshrl.u32 %v122, 7
  %v124 = vsub.s32 1, %v123
  %v125 = vrot.slane %v84, %v124
  %v126 = vmul.f32 %v116, %v125
  %v127 = vmul.f32 %v120, %v125
  %v128 = vadd.f32 %v112, %v126
  %v129 = vadd.f32 %v113, %v127
  %130 = vset.pattern.permute.xlu0 2
  %131 = vperm.xlu0 %130, %v30
  %v132 = vpop.permute.xlu0 %131
  %134 = vset.pattern.permute.xlu0 2
  %135 = vperm.xlu0 %134, %v31
  %v136 = vpop.permute.xlu0 %135
  %v138 = vlaneseq
  %v139 = vshrl.u32 %v138, 7
  %v140 = vsub.s32 2, %v139
  %v141 = vrot.slane %v84, %v140
  %v142 = vmul.f32 %v132, %v141
  %v143 = vmul.f32 %v136, %v141
  %v144 = vadd.f32 %v128, %v142
  %v145 = vadd.f32 %v129, %v143
  %146 = vset.pattern.permute.xlu0 3
  %147 = vperm.xlu0 %146, %v30
  %v148 = vpop.permute.xlu0 %147
  %150 = vset.pattern.permute.xlu0 3
  %151 = vperm.xlu0 %150, %v31
  %v152 = vpop.permute.xlu0 %151
  %v154 = vlaneseq
  %v155 = vshrl.u32 %v154, 7
  %v156 = vsub.s32 3, %v155
  %v157 = vrot.slane %v84, %v156
  %v158 = vmul.f32 %v148, %v157
  %v159 = vmul.f32 %v152, %v157
  %v160 = vadd.f32 %v144, %v158
  %v161 = vadd.f32 %v145, %v159
  %162 = vset.pattern.permute.xlu0 4
  %163 = vperm.xlu0 %162, %v30
  %v164 = vpop.permute.xlu0 %163
  %166 = vset.pattern.permute.xlu0 4
  %167 = vperm.xlu0 %166, %v31
  %v168 = vpop.permute.xlu0 %167
  %v170 = vlaneseq
  %v171 = vshrl.u32 %v170, 7
  %v172 = vsub.s32 4, %v171
  %v173 = vrot.slane %v84, %v172
  %v174 = vmul.f32 %v164, %v173
  %v175 = vmul.f32 %v168, %v173
  %v176 = vadd.f32 %v160, %v174
  %v177 = vadd.f32 %v161, %v175
  %178 = vset.pattern.permute.xlu0 5
  %179 = vperm.xlu0 %178, %v30
  %v180 = vpop.permute.xlu0 %179
  %182 = vset.pattern.permute.xlu0 5
  %183 = vperm.xlu0 %182, %v31
  %v184 = vpop.permute.xlu0 %183
  %v186 = vlaneseq
  %v187 = vshrl.u32 %v186, 7
  %v188 = vsub.s32 5, %v187
  %v189 = vrot.slane %v84, %v188
  %v190 = vmul.f32 %v180, %v189
  %v191 = vmul.f32 %v184, %v189
  %v192 = vadd.f32 %v176, %v190
  %v193 = vadd.f32 %v177, %v191
  %194 = vset.pattern.permute.xlu0 6
  %195 = vperm.xlu0 %194, %v30
  %v196 = vpop.permute.xlu0 %195
  %198 = vset.pattern.permute.xlu0 6
  %199 = vperm.xlu0 %198, %v31
  %v200 = vpop.permute.xlu0 %199
  %v202 = vlaneseq
  %v203 = vshrl.u32 %v202, 7
  %v204 = vsub.s32 6, %v203
  %v205 = vrot.slane %v84, %v204
  %v206 = vmul.f32 %v196, %v205
  %v207 = vmul.f32 %v200, %v205
  %v208 = vadd.f32 %v192, %v206
  %v209 = vadd.f32 %v193, %v207
  %210 = vset.pattern.permute.xlu0 7
  %211 = vperm.xlu0 %210, %v30
  %v212 = vpop.permute.xlu0 %211
  %214 = vset.pattern.permute.xlu0 7
  %215 = vperm.xlu0 %214, %v31
  %v216 = vpop.permute.xlu0 %215
  %v218 = vlaneseq
  %v219 = vshrl.u32 %v218, 7
  %v220 = vsub.s32 7, %v219
  %v221 = vrot.slane %v84, %v220
  %v222 = vmul.f32 %v212, %v221
  %v223 = vmul.f32 %v216, %v221
  %v224 = vadd.f32 %v208, %v222
  %v225 = vadd.f32 %v209, %v223
  %226 = vset.pattern.permute.xlu0 8
  %227 = vperm.xlu0 %226, %v30
  %v228 = vpop.permute.xlu0 %227
  %230 = vset.pattern.permute.xlu0 8
  %231 = vperm.xlu0 %230, %v31
  %v232 = vpop.permute.xlu0 %231
  %v234 = vlaneseq
  %v235 = vshrl.u32 %v234, 7
  %v236 = vsub.s32 0, %v235
  %v237 = vrot.slane %v85, %v236
  %v238 = vmul.f32 %v228, %v237
  %v239 = vmul.f32 %v232, %v237
  %v240 = vadd.f32 %v224, %v238
  %v241 = vadd.f32 %v225, %v239
  %242 = vset.pattern.permute.xlu0 9
  %243 = vperm.xlu0 %242, %v30
  %v244 = vpop.permute.xlu0 %243
  %246 = vset.pattern.permute.xlu0 9
  %247 = vperm.xlu0 %246, %v31
  %v248 = vpop.permute.xlu0 %247
  %v250 = vlaneseq
  %v251 = vshrl.u32 %v250, 7
  %v252 = vsub.s32 1, %v251
  %v253 = vrot.slane %v85, %v252
  %v254 = vmul.f32 %v244, %v253
  %v255 = vmul.f32 %v248, %v253
  %v256 = vadd.f32 %v240, %v254
  %v257 = vadd.f32 %v241, %v255
  %v258 = vtanh.pop %v256
  %v259 = vtanh.pop %v257
  %261 = vset.pattern.permute.xlu0 0
  %262 = vperm.xlu0 %261, %v32
  %v263 = vpop.permute.xlu0 %262
  %266 = vset.pattern.permute.xlu0 0
  %267 = vperm.xlu0 %266, %v33
  %v268 = vpop.permute.xlu0 %267
  %v270 = vmul.f32 %v263, %v258
  %v271 = vmul.f32 %v268, %v259
  %vm272 = vcmask 1041408
  %v273 = vsel %vm272, %v271, 0.0
  %v274 = vadd.f32 %v270, %v273
  %v275 = vrot.slane %v274, 4
  %v276 = vadd.f32 %v274, %v275
  %v277 = vrot.slane %v276, 2
  %v278 = vadd.f32 %v276, %v277
  %v279 = vrot.slane %v278, 1
  %v280 = vadd.f32 %v278, %v279
  %282 = vset.pattern.permute.xlu0 0
  %283 = vperm.xlu0 %282, %v38
  %v284 = vpop.permute.xlu0 %283
  %v286 = vlaneseq
  %v287 = vshrl.u32 %v286, 7
  %v288 = vsub.s32 0, %v287
  %v289 = vrot.slane %v284, %v288
  %v290 = vadd.f32 %v289, %v280
  %291 = vst [vmem:[%s7] sm:$0x1] %v290
  // Predicated region
  $region30: #{net_forward.1} parent=0 // pred_check
    _
  $region31: #{net_forward.1} parent=0 // pred_check_branch
    %293 = sbr.rel (0) target = $region33
  $region32: #{net_forward.1} parent=0 // pred_region
    _
  $region33: #{net_forward.1} parent=0 // pred_fallthru
    _
  // Predicated region
  $region34: #{net_forward.1} parent=0 // pred_check
    _
  $region35: #{net_forward.1} parent=0 // pred_check_branch
    %295 = sbr.rel (0) target = $region37
  $region36: #{net_forward.1} parent=0 // pred_region
    _
  $region37: #{net_forward.1} parent=0 // pred_fallthru
    _

</llo_original>
